<compile_context>
chip_gen: v7x
topology: tpu7x:2x2x1
jax: 0.10.0
libtpu: 0.0.40
codegen_flags: <defaults>
</compile_context>

<pallas_src>
import jax
import jax.numpy as jnp
import numpy as np
from jax.experimental import pallas as pl
from jax.experimental.pallas import tpu as pltpu


def _permute_kernel(perm_ref, x_ref, out_ref):
    """out[:, j] = x[:, perm[j]] via an exact in-kernel one-hot MXU matmul."""
    F = x_ref.shape[-1]        # full feature (contraction) extent
    tn = out_ref.shape[-1]     # output-feature tile width

    perm = perm_ref[...]       # (1, tn) int32: source column for each output column
    # P[i, j] = 1 iff i == perm[j]; built in-registers/VMEM, never streamed from HBM.
    row_ids = jax.lax.broadcasted_iota(jnp.int32, (F, tn), 0)
    pmat = (row_ids == perm).astype(x_ref.dtype)   # exact 0/1 in the input dtype

    out_ref[...] = jnp.dot(
        x_ref[...], pmat, preferred_element_type=jnp.float32
    ).astype(out_ref.dtype)


def _pick_block(dim, target, align):
    """Largest block <= target that is a multiple of `align` and divides `dim`;
    fall back to the full extent (always a legal block shape) otherwise."""
    if dim <= target or dim % align != 0:
        return dim
    blk = max(align, target - (target % align))
    while dim % blk != 0:
        blk -= align
    return blk


def random_permutation_forward(inputs, permutation):
    """Pallas equivalent of RandomPermutation.forward.

    Args:
      inputs:      [B, F] array (float32 or bfloat16).
      permutation: [F] integer permutation indices (the module's `_permutation` buffer).

    Returns:
      (outputs [B, F], logabsdet [B]) with outputs[b, j] = inputs[b, permutation[j]].
    """
    B, F = inputs.shape
    perm2d = permutation.astype(jnp.int32).reshape(1, F)
    itemsize = jnp.dtype(inputs.dtype).itemsize

    # Output-feature tile: lane-aligned, capped so the in-kernel one-hot
    # intermediates (int32 iota + pmat ~ 8*F*tn bytes) stay under ~4 MiB.
    tn_target = (4 << 20) // max(8 * F, 1)
    tn_target = max(128, min(512, (tn_target // 128) * 128))
    tn = _pick_block(F, tn_target, 128)

    # Batch tile: sublane-aligned, grown for small F (amortize per-step overhead),
    # capped so the x slab (tm x F) stays around ~2 MiB per buffer.
    tm_target = (2 << 20) // max(F * itemsize, 1)
    tm_target = max(256, min(1024, (tm_target // 8) * 8))
    tm = _pick_block(B, tm_target, 8)

    cost = pl.CostEstimate(
        flops=2 * B * F * F,                              # one-hot matmul path
        transcendentals=0,
        bytes_accessed=2 * B * F * itemsize + 4 * F,      # x + out + perm indices
    )

    out = pl.pallas_call(
        _permute_kernel,
        out_shape=jax.ShapeDtypeStruct((B, F), inputs.dtype),
        grid=(pl.cdiv(B, tm), pl.cdiv(F, tn)),
        in_specs=[
            pl.BlockSpec((1, tn), lambda i, j: (0, j)),   # permutation-index tile (tiny)
            pl.BlockSpec((tm, F), lambda i, j: (i, 0)),   # full feature row block (K dim),
                                                          # constant across j -> DMA skipped
        ],
        out_specs=pl.BlockSpec((tm, tn), lambda i, j: (i, j)),
        compiler_params=pltpu.CompilerParams(
            dimension_semantics=("parallel", "parallel")
        ),
        cost_estimate=cost,
    )(perm2d, inputs)

    # No volume change for a permutation; produced outside the kernel so the kernel
    # only emits one lane-dense output stream.
    logabsdet = jnp.zeros((B,), dtype=inputs.dtype)
    return out, logabsdet


def _check(x, permutation):
    outputs, logabsdet = random_permutation_forward(x, permutation)
    outputs = jax.block_until_ready(outputs)
    logabsdet = jax.block_until_ready(logabsdet)

    ref_out = np.asarray(x)[:, np.asarray(permutation)]
    assert outputs.shape == x.shape
    assert logabsdet.shape == (x.shape[0],)
    np.testing.assert_allclose(np.asarray(outputs), ref_out, rtol=0, atol=0)
    np.testing.assert_array_equal(
        np.asarray(logabsdet), np.zeros((x.shape[0],), np.asarray(logabsdet).dtype)
    )


if __name__ == "__main__":
    key = jax.random.PRNGKey(0)

    # Primary small demo consistent with the module: batch=2, num_features=32.
    B, F = 2, 32
    k_perm, k_x, key = jax.random.split(key, 3)
    permutation = jax.random.permutation(k_perm, F).astype(jnp.int32)
    x = jax.random.normal(k_x, (B, F), dtype=jnp.float32)
    _check(x, permutation)

    # Secondary check exercising the tiled / pipelined path (multi-tile grid) and bf16.
    B2, F2 = 2048, 640
    k_perm2, k_x2, key = jax.random.split(key, 3)
    permutation2 = jax.random.permutation(k_perm2, F2).astype(jnp.int32)
    x2 = jax.random.normal(k_x2, (B2, F2), dtype=jnp.bfloat16)
    _check(x2, permutation2)

    print("KERNEL_OK")
</pallas_src>

<mosaic_0001>
module attributes {stable_mosaic.version = 11 : i64} {
  func.func @_permute_kernel(%arg0: i32, %arg1: i32, %arg2: memref<1x32xi32, #tpu.memory_space<vmem>>, %arg3: memref<2x32xf32, #tpu.memory_space<vmem>>, %arg4: memref<2x32xf32, #tpu.memory_space<vmem>>) attributes {dimension_semantics = [#tpu.dimension_semantics<parallel>, #tpu.dimension_semantics<parallel>], iteration_bounds = array<i64: 1, 1>, scalar_prefetch = 0 : i64, scratch_operands = 0 : i64, tpu.core_type = #tpu.core_type<tc>, window_params = [{transform_indices = @transform_0, window_bounds = array<i64: 1, 32>}, {transform_indices = @transform_1, window_bounds = array<i64: 2, 32>}, {transform_indices = @transform_2, window_bounds = array<i64: 2, 32>}]} {
    %c0 = arith.constant 0 : index
    %c0_0 = arith.constant 0 : index
    %0 = vector.load %arg2[%c0, %c0_0] : memref<1x32xi32, #tpu.memory_space<vmem>>, vector<1x32xi32>
    %1 = tpu.iota {dimensions = array<i32: 0>} : vector<32x32xi32>
    %2 = vector.broadcast %0 : vector<1x32xi32> to vector<32x32xi32>
    %3 = arith.cmpi eq, %1, %2 : vector<32x32xi32>
    %4 = arith.extui %3 : vector<32x32xi1> to vector<32x32xi32>
    %5 = arith.sitofp %4 : vector<32x32xi32> to vector<32x32xf32>
    %c0_1 = arith.constant 0 : index
    %c0_2 = arith.constant 0 : index
    %6 = vector.load %arg3[%c0_1, %c0_2] : memref<2x32xf32, #tpu.memory_space<vmem>>, vector<2x32xf32>
    %cst = arith.constant dense<0.000000e+00> : vector<2x32xf32>
    %7 = tpu.matmul %6, %5, %cst {dimension_numbers = #tpu.dot_dimension_numbers<[1], [0], [0], [1], [0, 0, 1, 1], [], []>} : vector<2x32xf32>, vector<32x32xf32>, vector<2x32xf32> -> vector<2x32xf32>
    %c0_3 = arith.constant 0 : index
    %c0_4 = arith.constant 0 : index
    %8 = vector.load %arg4[%c0_3, %c0_4] : memref<2x32xf32, #tpu.memory_space<vmem>>, vector<2x32xf32>
    tpu.vector_store %arg4[%c0_3, %c0_4], %7 {strides = array<i32>} : memref<2x32xf32, #tpu.memory_space<vmem>>, vector<2x32xf32>,
    return
  }
  func.func @transform_0(%arg0: i32, %arg1: i32) -> (i32, i32) {
    %c0_i32 = arith.constant 0 : i32
    %c0_i32_0 = arith.constant 0 : i32
    return %c0_i32, %arg1 : i32, i32
  }
  func.func @transform_1(%arg0: i32, %arg1: i32) -> (i32, i32) {
    %c0_i32 = arith.constant 0 : i32
    %c0_i32_0 = arith.constant 0 : i32
    return %arg0, %c0_i32 : i32, i32
  }
  func.func @transform_2(%arg0: i32, %arg1: i32) -> (i32, i32) {
    %c0_i32 = arith.constant 0 : i32
    return %arg0, %arg1 : i32, i32
  }
}

</mosaic_0001>

<llo_original>
// kernel: tpu_custom_call.1
$region0: #{tpu_custom_call.1}
  #allocation0 [shape = 'u32[]', space=smem, size = 0x4, offset = 0x4, fixed_abs, tag = 'smem constant byte address 0x4 - core index']
  #allocation1 [shape = 'u32[144,128]{1,0:T(1,128)}', space=vmem, size = 0x12000, scoped, tag = 'internal scratch']
  %s0 = inlined_call_operand.hbm [shape: s32[1,32], index: 0, kind: input, shape index: {}]
  %s1 = inlined_call_operand.vmem [shape: f32[2,32], index: 1, kind: input, shape index: {}]
  %s2 = inlined_call_operand.hbm [shape: f32[2,32], index: 2, kind: output, shape index: {}]
  %s3 = sld [smem:[#allocation0]]
  $region22: #{tpu_custom_call.1} parent=0
    _
  %s5 = ssub.s32 1, %s3
  %s6 = scalar_select 0, %s5, %s3
  $region1: #{tpu_custom_call.1} parent=0
    #allocation2 [shape = 'u8[512]{0}', space=vmem, size = 0x400, scoped, tag = 'input window, operand 0, single buffered']
    #allocation3 [shape = 's32[1]{0}', space=sflag, size = 0x4, scoped, tag = 'scoped memory for tpu_custom_call.1']
    #allocation4 [shape = 's32[1]{0}', space=sflag, size = 0x4, scoped, tag = 'scoped memory for tpu_custom_call.1']
    #allocation5 [shape = 'u8[1024]{0}', space=vmem, size = 0x400, scoped, tag = 'output window, operand 0, single buffered']
    %7 = vsyncpa [#allocation3], 0
    %8 = vsyncpa [#allocation4], 0
    // Predicated region
    $region2: #{tpu_custom_call.1} parent=1 // pred_check
      _
    $region3: #{tpu_custom_call.1} parent=1 // pred_check_branch
      %10 = sbr.rel (0) target = $region5
    $region4: #{tpu_custom_call.1} parent=1 // pred_region
      %s12 = ssub.s32 16, 16
      %13 = vsyncadd [#allocation3], %s12
      %s15 = sshll.u32 [#allocation2], 4
      %s16 = int_to_ptr.vmem [resolvable:$true] %s15
      %18 = dma.hbm_to_vmem [thread:$0]  %s0, 16, %s16, [#allocation3]
    $region5: #{tpu_custom_call.1} parent=1 // pred_fallthru
      _
    // Predicated region
    $region6: #{tpu_custom_call.1} parent=1 // pred_check
      _
    $region7: #{tpu_custom_call.1} parent=1 // pred_check_branch
      %20 = sbr.rel (0) target = $region9
    $region8: #{tpu_custom_call.1} parent=1 // pred_region
      _
    $region9: #{tpu_custom_call.1} parent=1 // pred_fallthru
      _
    // Predicated region
    $region10: #{tpu_custom_call.1} parent=1 // pred_check
      _
    $region11: #{tpu_custom_call.1} parent=1 // pred_check_branch
      %22 = sbr.rel (0) target = $region13
    $region12: #{tpu_custom_call.1} parent=1 // pred_region
      %23 = dma.done [#allocation3], 16
    $region13: #{tpu_custom_call.1} parent=1 // pred_fallthru
      _
    %v24 = vld [vmem:[#allocation2] sm:$0x1]
    %v25 = vlaneseq
    %v26 = vshrl.u32 %v25, 7
    %v27 = vadd.s32 %v26, 8
    %v28 = vadd.s32 %v26, 16
    %v29 = vadd.s32 %v26, 24
    %v30 = vlaneseq
    %v31 = vshrl.u32 %v30, 7
    %v32 = vsub.s32 0, %v31
    %v33 = vrot.slane %v24, %v32
    %vm34 = vcmp.eq.s32.totalorder %v26, %v33
    %vm35 = vcmp.eq.s32.totalorder %v27, %v33
    %vm36 = vcmp.eq.s32.totalorder %v28, %v33
    %vm37 = vcmp.eq.s32.totalorder %v29, %v33
    %v38 = vsel %vm34, 1, 0
    %v39 = vsel %vm35, 1, 0
    %v40 = vsel %vm36, 1, 0
    %v41 = vsel %vm37, 1, 0
    %v42 = vcvt.s32.f32 %v38
    %v43 = vcvt.s32.f32 %v39
    %v44 = vcvt.s32.f32 %v40
    %v45 = vcvt.s32.f32 %v41
    %v46 = vld [vmem:[%s1] sm:$0x3]
    %vm47 = vcmask 261120
    %v49 = vsel %vm47, %v46, 0
    %51 = vmatprep.subr.mxu0 0.0
    %52 = vmatpush1.msra.mxu0 %v42
    %53 = vmatprep.subr.mxu0 0.0
    %54 = vmatpush1.msra.mxu0 %v43
    %55 = vmatprep.subr.mxu0 0.0
    %56 = vmatpush1.msra.mxu0 %v44
    %57 = vmatprep.subr.mxu0 0.0
    %58 = vmatpush1.msra.mxu0 %v45
    %59 = vmatprep.subr.mxu0 0.0
    %60 = vmatpush1.msra.mxu0 0.0
    %61 = vmatprep.subr.mxu0 0.0
    %62 = vmatpush1.msra.mxu0 0.0
    %63 = vmatprep.subr.mxu0 0.0
    %64 = vmatpush1.msra.mxu0 0.0
    %65 = vmatprep.subr.mxu0 0.0
    %66 = vmatpush1.msra.mxu0 0.0
    %67 = vmatprep.subr.mxu0 0.0
    %68 = vmatpush1.msra.mxu0 0.0
    %69 = vmatprep.subr.mxu0 0.0
    %70 = vmatpush1.msra.mxu0 0.0
    %71 = vmatprep.subr.mxu0 0.0
    %72 = vmatpush1.msra.mxu0 0.0
    %73 = vmatprep.subr.mxu0 0.0
    %74 = vmatpush1.msra.mxu0 0.0
    %75 = vmatprep.subr.mxu0 0.0
    %76 = vmatpush1.msra.mxu0 0.0
    %77 = vmatprep.subr.mxu0 0.0
    %78 = vmatpush1.msra.mxu0 0.0
    %79 = vmatprep.subr.mxu0 0.0
    %80 = vmatpush1.msra.mxu0 0.0
    %81 = vmatprep.subr.mxu0 0.0
    %82 = vmatpush1.msra.mxu0 0.0
    %83 = vmatprep.subr.mxu0 0.0
    %84 = vmatpush1.msra.mxu0 0.0
    %85 = vmatprep.subr.mxu0 0.0
    %86 = vmatpush1.msra.mxu0 0.0
    %87 = vmatprep.subr.mxu0 0.0
    %88 = vmatpush1.msra.mxu0 0.0
    %89 = vmatprep.subr.mxu0 0.0
    %90 = vmatpush1.msra.mxu0 0.0
    %91 = vmatprep.subr.mxu0 0.0
    %92 = vmatpush1.msra.mxu0 0.0
    %93 = vmatprep.subr.mxu0 0.0
    %94 = vmatpush1.msra.mxu0 0.0
    %95 = vmatprep.subr.mxu0 0.0
    %96 = vmatpush1.msra.mxu0 0.0
    %97 = vmatprep.subr.mxu0 0.0
    %98 = vmatpush1.msra.mxu0 0.0
    %99 = vmatprep.subr.mxu0 0.0
    %100 = vmatpush1.msra.mxu0 0.0
    %101 = vmatprep.subr.mxu0 0.0
    %102 = vmatpush1.msra.mxu0 0.0
    %103 = vmatprep.subr.mxu0 0.0
    %104 = vmatpush1.msra.mxu0 0.0
    %105 = vmatprep.subr.mxu0 0.0
    %106 = vmatpush1.msra.mxu0 0.0
    %107 = vmatprep.subr.mxu0 0.0
    %108 = vmatpush1.msra.mxu0 0.0
    %109 = vmatprep.subr.mxu0 0.0
    %110 = vmatpush1.msra.mxu0 0.0
    %111 = vmatprep.subr.mxu0 0.0
    %112 = vmatpush1.msra.mxu0 0.0
    %113 = vmatprep.subr.mxu0 0.0
    %114 = vmatpush1.msra.mxu0 0.0
    %115 = vmatprep.mubr.f32.mxu0 0.0
    %116 = vmatmul.mubr.f32.gmra.mrb[0].mxu0 %v49
    %v117 = vpop.f32.mrb[0].mxu0
    %v118 = vadd.f32 0.0, %v117
    %v119 = vpop.f32.mrb[0].mxu0
    %120 = vdwg.mxu0
    %vm121 = vcmask 254976
    %122 = vst.msk [vmem:[#allocation5] sm:$0x3] %vm121, %v118
    // Predicated region
    $region14: #{tpu_custom_call.1} parent=1 // pred_check
      _
    $region15: #{tpu_custom_call.1} parent=1 // pred_check_branch
      %124 = sbr.rel (0) target = $region17
    $region16: #{tpu_custom_call.1} parent=1 // pred_region
      %s126 = ssub.s32 32, 32
      %127 = vsyncadd [#allocation4], %s126
      %s129 = sshll.u32 [#allocation5], 4
      %s130 = int_to_ptr.vmem [resolvable:$true] %s129
      %132 = dma.vmem_to_hbm [thread:$0]  %s130, 32, %s2, [#allocation4]
    $region17: #{tpu_custom_call.1} parent=1 // pred_fallthru
      _
    // Predicated region
    $region18: #{tpu_custom_call.1} parent=1 // pred_check
      _
    $region19: #{tpu_custom_call.1} parent=1 // pred_check_branch
      %134 = sbr.rel (0) target = $region21
    $region20: #{tpu_custom_call.1} parent=1 // pred_region
      %135 = dma.done [#allocation4], 32
    $region21: #{tpu_custom_call.1} parent=1 // pred_fallthru
      _
    %136 = vsyncpa [#allocation3], 1
    %137 = vsyncpa [#allocation4], 1

</llo_original>
